<compile_context>
chip_gen: v5e
topology: v5e:2x2
jax: 0.10.0
libtpu: 0.0.40
codegen_flags: <defaults>
</compile_context>

<pallas_src>
import jax
import jax.numpy as jnp
from jax.experimental import pallas as pl
from jax.experimental.pallas import tpu as pltpu


def time_embedding_kernel(x_ref, w1_ref, b1_ref, w2_ref, s2_ref, b2_ref, o_ref):
    # Grid: (j over N tiles of linear_2, i over M tiles); both axes "parallel"
    # (no cross-iteration state, so megacore may split either axis).

    # linear_1 + SiLU, f32 accumulation on the MXU, f32 VPU/EUP math.
    # Recomputed per step: w1/x blocks have constant indices over j so they
    # stay resident in VMEM; the redundant MFLOPs hide under the w2 DMA.
    h = jnp.dot(x_ref[...], w1_ref[...], preferred_element_type=jnp.float32)
    h = h + b1_ref[...]                          # bias add in f32
    h = h * jax.nn.sigmoid(h)                    # SiLU in f32 (EUP sigmoid)
    h = h.astype(jnp.bfloat16)                   # single cast for matmul 2

    # linear_2 tile: int8 weights -> bf16 (exact int8->f32->bf16), MXU with
    # f32 accumulation, per-output-channel scale applied post-accumulation.
    w2 = w2_ref[...].astype(jnp.float32).astype(jnp.bfloat16)
    out = jnp.dot(h, w2, preferred_element_type=jnp.float32)
    o_ref[...] = (out * s2_ref[...] + b2_ref[...]).astype(o_ref.dtype)


def _pick_tn(hidden: int, w2_itemsize: int, max_tile_bytes: int = 4 << 20) -> int:
    """Largest lane-dense N tile for linear_2's output.

    Prefer >= 2 tiles (megacore split of the w2 stream + DMA/compute overlap)
    but never let a single w2 tile exceed `max_tile_bytes`.
    """
    divisors = [d for d in range(128, hidden + 1, 128) if hidden % d == 0]
    if not divisors:
        return hidden                                # hidden < 128: full block
    fits = [d for d in divisors if hidden * d * w2_itemsize <= max_tile_bytes]
    if not fits:
        return divisors[0]
    two_plus = [d for d in fits if hidden // d >= 2]
    return max(two_plus) if two_plus else max(fits)


def _vmem_block_bytes(shape, dtype):
    """Padded VMEM footprint of one block ((sublane, lane) tile padding)."""
    itemsize = jnp.dtype(dtype).itemsize
    r, c = (shape[-2], shape[-1]) if len(shape) >= 2 else (1, shape[-1])
    sub = max(8, 32 // itemsize)                     # sublane packing per dtype
    return (-(-r // sub) * sub) * (-(-c // 128) * 128) * itemsize


def time_embedding(x, w1, b1, w2, b2):
    """x: (B, n_embed) -> (B, 4*n_embed), f32 output.

    Weights are (in_features, out_features); biases broadcastable to
    (1, out_features).  x/w1 are streamed as bf16; w2 as int8 with a
    per-output-channel f32 scale.  All matmuls accumulate in f32.
    """
    B, n_embed = x.shape
    hidden = w1.shape[1]
    assert w1.shape == (n_embed, hidden)
    assert w2.shape == (hidden, hidden)

    # ---- M (batch) tiling: pad tiny batches up to a multiple of 8 sublanes.
    tm = 8 * pl.cdiv(B, 8) if B <= 128 else 128
    m_pad = pl.cdiv(B, tm) * tm
    m_tiles = m_pad // tm

    # ---- N tiling of linear_2's output (int8 w2 -> 1 byte/elem).
    tn = _pick_tn(hidden, w2_itemsize=1)
    n_tiles = hidden // tn
    # j (N) outer, i (M) inner: w2's block index is constant across i, so it
    # is never re-streamed per M tile even when B > 128.
    grid = (n_tiles, m_tiles)

    # ---- dtype / layout prep (bf16 activations, int8 w2 + f32 scales).
    x_p = jnp.pad(x.astype(jnp.bfloat16), ((0, m_pad - B), (0, 0)))
    w1b = w1.astype(jnp.bfloat16)
    b1f = jnp.asarray(b1, jnp.float32).reshape(1, hidden)
    b2f = jnp.asarray(b2, jnp.float32).reshape(1, hidden)

    # Symmetric per-output-channel int8 quantization of w2 (weight prep;
    # constant-folds under jit).
    w2f = jnp.asarray(w2, jnp.float32)
    absmax = jnp.max(jnp.abs(w2f), axis=0, keepdims=True)            # (1, hidden)
    s2 = jnp.where(absmax > 0, absmax / 127.0, 1.0).astype(jnp.float32)
    w2q = jnp.clip(jnp.round(w2f / s2), -127, 127).astype(jnp.int8)

    # ---- VMEM budget from actual (double-buffered) block footprint.
    block_footprint = sum(
        2 * _vmem_block_bytes(s, d)
        for s, d in [((tm, n_embed), jnp.bfloat16),     # x
                     ((n_embed, hidden), jnp.bfloat16), # w1 (resident)
                     ((1, hidden), jnp.float32),        # b1 (resident)
                     ((hidden, tn), jnp.int8),          # w2 stream
                     ((1, tn), jnp.float32),            # s2
                     ((1, tn), jnp.float32),            # b2
                     ((tm, tn), jnp.float32)])          # out
    vmem_limit = int(min(max(2 * block_footprint + (4 << 20), 16 << 20), 64 << 20))

    cost = pl.CostEstimate(
        flops=(2 * m_pad * n_embed * hidden * n_tiles       # linear_1 per N tile
               + 2 * m_pad * hidden * hidden),              # linear_2
        transcendentals=m_pad * hidden * n_tiles,
        bytes_accessed=(x_p.size * 2 + w1b.size * 2 + b1f.size * 4
                        + w2q.size * 1 + s2.size * 4 + b2f.size * 4
                        + m_pad * hidden * 4),
    )

    out = pl.pallas_call(
        time_embedding_kernel,
        out_shape=jax.ShapeDtypeStruct((m_pad, hidden), jnp.float32),
        grid_spec=pltpu.PrefetchScalarGridSpec(
            num_scalar_prefetch=0,
            grid=grid,
            in_specs=[
                pl.BlockSpec((tm, n_embed), lambda j, i: (i, 0)),      # x (per M tile)
                pl.BlockSpec((n_embed, hidden), lambda j, i: (0, 0)),  # w1 resident
                pl.BlockSpec((1, hidden), lambda j, i: (0, 0)),        # b1 resident
                pl.BlockSpec((hidden, tn), lambda j, i: (0, j)),       # w2 int8 stream
                pl.BlockSpec((1, tn), lambda j, i: (0, j)),            # per-channel scale
                pl.BlockSpec((1, tn), lambda j, i: (0, j)),            # b2 tile
            ],
            out_specs=pl.BlockSpec((tm, tn), lambda j, i: (i, j)),
        ),
        compiler_params=pltpu.CompilerParams(
            dimension_semantics=("parallel", "parallel"),
            vmem_limit_bytes=vmem_limit,
        ),
        cost_estimate=cost,
    )(x_p, w1b, b1f, w2q, s2, b2f)

    return out[:B]


def init_params(key, n_embed, dtype=jnp.float32):
    """Deterministic synthetic init matching nn.Linear shapes.
    PyTorch stores (out, in); we store the transposed (in, out)."""
    k1, k2, k3, k4 = jax.random.split(key, 4)
    d_hidden = 4 * n_embed
    w1 = jax.random.normal(k1, (n_embed, d_hidden), dtype) * (1.0 / jnp.sqrt(n_embed))
    b1 = jax.random.normal(k2, (1, d_hidden), dtype) * 0.01
    w2 = jax.random.normal(k3, (d_hidden, d_hidden), dtype) * (1.0 / jnp.sqrt(d_hidden))
    b2 = jax.random.normal(k4, (1, d_hidden), dtype) * 0.01
    return w1, b1, w2, b2


def reference(x, w1, b1, w2, b2):
    """Pure f32 reference of the PyTorch forward."""
    h = x @ w1 + b1
    h = h * jax.nn.sigmoid(h)
    return h @ w2 + b2


if __name__ == "__main__":
    key = jax.random.PRNGKey(0)
    kx, kp = jax.random.split(key)

    n_embed = 32        # small, shape-consistent with TimeEmbedding(n_embed)
    batch = 2
    hidden = 4 * n_embed
    x = jax.random.normal(kx, (batch, n_embed), jnp.float32)
    w1, b1, w2, b2 = init_params(kp, n_embed)

    out = jax.block_until_ready(time_embedding(x, w1, b1, w2, b2))
    assert out.shape == (batch, hidden), out.shape

    # Tight check: reference built from the same rounded operands the kernel
    # streams (bf16 x/w1/h, int8 + per-channel-scale w2).
    xb = x.astype(jnp.bfloat16).astype(jnp.float32)
    w1b = w1.astype(jnp.bfloat16).astype(jnp.float32)
    w2f = w2.astype(jnp.float32)
    absmax = jnp.max(jnp.abs(w2f), axis=0, keepdims=True)
    s2 = jnp.where(absmax > 0, absmax / 127.0, 1.0)
    w2_deq = jnp.clip(jnp.round(w2f / s2), -127, 127) * s2
    h = xb @ w1b + b1
    h = h * jax.nn.sigmoid(h)
    h = h.astype(jnp.bfloat16).astype(jnp.float32)
    ref = h @ w2_deq + b2
    assert jnp.allclose(out, ref, atol=2e-2, rtol=2e-2), \
        float(jnp.max(jnp.abs(out - ref)))

    # Loose sanity check vs. the unquantized f32 PyTorch forward (documents
    # bf16/int8 drift; TimeEmbedding MLP tolerates this easily).
    ref_f32 = reference(x, w1, b1, w2, b2)
    assert jnp.allclose(out, ref_f32, atol=1e-1, rtol=1e-1), \
        float(jnp.max(jnp.abs(out - ref_f32)))

    print("KERNEL_OK")
</pallas_src>

<mosaic_0001>
module attributes {stable_mosaic.version = 11 : i64} {
  func.func @time_embedding_kernel(%arg0: i32, %arg1: i32, %arg2: memref<8x32xbf16, #tpu.memory_space<vmem>>, %arg3: memref<32x128xbf16, #tpu.memory_space<vmem>>, %arg4: memref<1x128xf32, #tpu.memory_space<vmem>>, %arg5: memref<128x128xi8, #tpu.memory_space<vmem>>, %arg6: memref<1x128xf32, #tpu.memory_space<vmem>>, %arg7: memref<1x128xf32, #tpu.memory_space<vmem>>, %arg8: memref<8x128xf32, #tpu.memory_space<vmem>>) attributes {dimension_semantics = [#tpu.dimension_semantics<parallel>, #tpu.dimension_semantics<parallel>], iteration_bounds = array<i64: 1, 1>, scalar_prefetch = 0 : i64, scratch_operands = 0 : i64, tpu.core_type = #tpu.core_type<tc>, window_params = [{transform_indices = @transform_0, window_bounds = array<i64: 8, 32>}, {pipeline_mode = #tpu.pipeline_mode<synchronous>, transform_indices = @transform_1, window_bounds = array<i64: 32, 128>}, {pipeline_mode = #tpu.pipeline_mode<synchronous>, transform_indices = @transform_2, window_bounds = array<i64: 1, 128>}, {transform_indices = @transform_3, window_bounds = array<i64: 128, 128>}, {transform_indices = @transform_4, window_bounds = array<i64: 1, 128>}, {transform_indices = @transform_5, window_bounds = array<i64: 1, 128>}, {transform_indices = @transform_6, window_bounds = array<i64: 8, 128>}]} {
    %c0 = arith.constant 0 : index
    %c0_0 = arith.constant 0 : index
    %0 = vector.load %arg2[%c0, %c0_0] : memref<8x32xbf16, #tpu.memory_space<vmem>>, vector<8x32xbf16>
    %c0_1 = arith.constant 0 : index
    %c0_2 = arith.constant 0 : index
    %1 = vector.load %arg3[%c0_1, %c0_2] : memref<32x128xbf16, #tpu.memory_space<vmem>>, vector<32x128xbf16>
    %cst = arith.constant dense<0.000000e+00> : vector<8x128xf32>
    %2 = tpu.matmul %0, %1, %cst {dimension_numbers = #tpu.dot_dimension_numbers<[1], [0], [0], [1], [0, 0, 1, 1], [], []>} : vector<8x32xbf16>, vector<32x128xbf16>, vector<8x128xf32> -> vector<8x128xf32>
    %c0_3 = arith.constant 0 : index
    %c0_4 = arith.constant 0 : index
    %3 = vector.load %arg4[%c0_3, %c0_4] : memref<1x128xf32, #tpu.memory_space<vmem>>, vector<1x128xf32>
    %4 = vector.broadcast %3 : vector<1x128xf32> to vector<8x128xf32>
    %5 = arith.addf %2, %4 : vector<8x128xf32>
    %6 = arith.negf %5 : vector<8x128xf32>
    %7 = math.exp %6 : vector<8x128xf32>
    %cst_5 = arith.constant 1.000000e+00 : f32
    %8 = vector.broadcast %cst_5 : f32 to vector<8x128xf32>
    %9 = arith.addf %8, %7 : vector<8x128xf32>
    %10 = arith.divf %8, %9 : vector<8x128xf32>
    %11 = arith.mulf %5, %10 : vector<8x128xf32>
    %12 = arith.truncf %11 : vector<8x128xf32> to vector<8x128xbf16>
    %c0_6 = arith.constant 0 : index
    %c0_7 = arith.constant 0 : index
    %13 = vector.load %arg5[%c0_6, %c0_7] : memref<128x128xi8, #tpu.memory_space<vmem>>, vector<128x128xi8>
    %14 = arith.sitofp %13 : vector<128x128xi8> to vector<128x128xf32>
    %15 = arith.truncf %14 : vector<128x128xf32> to vector<128x128xbf16>
    %cst_8 = arith.constant dense<0.000000e+00> : vector<8x128xf32>
    %16 = tpu.matmul %12, %15, %cst_8 {dimension_numbers = #tpu.dot_dimension_numbers<[1], [0], [0], [1], [0, 0, 1, 1], [], []>} : vector<8x128xbf16>, vector<128x128xbf16>, vector<8x128xf32> -> vector<8x128xf32>
    %c0_9 = arith.constant 0 : index
    %c0_10 = arith.constant 0 : index
    %17 = vector.load %arg6[%c0_9, %c0_10] : memref<1x128xf32, #tpu.memory_space<vmem>>, vector<1x128xf32>
    %18 = vector.broadcast %17 : vector<1x128xf32> to vector<8x128xf32>
    %19 = arith.mulf %16, %18 : vector<8x128xf32>
    %c0_11 = arith.constant 0 : index
    %c0_12 = arith.constant 0 : index
    %20 = vector.load %arg7[%c0_11, %c0_12] : memref<1x128xf32, #tpu.memory_space<vmem>>, vector<1x128xf32>
    %21 = vector.broadcast %20 : vector<1x128xf32> to vector<8x128xf32>
    %22 = arith.addf %19, %21 : vector<8x128xf32>
    %c0_13 = arith.constant 0 : index
    %c0_14 = arith.constant 0 : index
    %23 = vector.load %arg8[%c0_13, %c0_14] : memref<8x128xf32, #tpu.memory_space<vmem>>, vector<8x128xf32>
    tpu.vector_store %arg8[%c0_13, %c0_14], %22 {strides = array<i32>} : memref<8x128xf32, #tpu.memory_space<vmem>>, vector<8x128xf32>,
    return
  }
  func.func @transform_0(%arg0: i32, %arg1: i32) -> (i32, i32) {
    %c0_i32 = arith.constant 0 : i32
    %c0_i32_0 = arith.constant 0 : i32
    return %arg1, %c0_i32 : i32, i32
  }
  func.func @transform_1(%arg0: i32, %arg1: i32) -> (i32, i32) {
    %c0_i32 = arith.constant 0 : i32
    %c0_i32_0 = arith.constant 0 : i32
    %c0_i32_1 = arith.constant 0 : i32
    return %c0_i32, %c0_i32_0 : i32, i32
  }
  func.func @transform_2(%arg0: i32, %arg1: i32) -> (i32, i32) {
    %c0_i32 = arith.constant 0 : i32
    %c0_i32_0 = arith.constant 0 : i32
    %c0_i32_1 = arith.constant 0 : i32
    return %c0_i32, %c0_i32_0 : i32, i32
  }
  func.func @transform_3(%arg0: i32, %arg1: i32) -> (i32, i32) {
    %c0_i32 = arith.constant 0 : i32
    %c0_i32_0 = arith.constant 0 : i32
    return %c0_i32, %arg0 : i32, i32
  }
  func.func @transform_4(%arg0: i32, %arg1: i32) -> (i32, i32) {
    %c0_i32 = arith.constant 0 : i32
    %c0_i32_0 = arith.constant 0 : i32
    return %c0_i32, %arg0 : i32, i32
  }
  func.func @transform_5(%arg0: i32, %arg1: i32) -> (i32, i32) {
    %c0_i32 = arith.constant 0 : i32
    %c0_i32_0 = arith.constant 0 : i32
    return %c0_i32, %arg0 : i32, i32
  }
  func.func @transform_6(%arg0: i32, %arg1: i32) -> (i32, i32) {
    %c0_i32 = arith.constant 0 : i32
    return %arg1, %arg0 : i32, i32
  }
}

</mosaic_0001>

<llo_original>
// kernel: tpu_custom_call.1
$region0: #{tpu_custom_call.1}
  #allocation0 [shape = 'u32[]', space=smem, size = 0x4, offset = 0x4, fixed_abs, tag = 'smem constant byte address 0x4 - core index']
  #allocation1 [shape = 'u32[72,128]{1,0:T(1,128)}', space=vmem, size = 0x9000, scoped, tag = 'internal scratch']
  %s0 = inlined_call_operand.hbm [shape: bf16[8,32], index: 0, kind: input, shape index: {}]
  %s1 = inlined_call_operand.hbm [shape: bf16[32,128], index: 1, kind: input, shape index: {}]
  %s2 = inlined_call_operand.vmem [shape: f32[1,128], index: 2, kind: input, shape index: {}]
  %s3 = inlined_call_operand.hbm [shape: s8[128,128], index: 3, kind: input, shape index: {}]
  %s4 = inlined_call_operand.vmem [shape: f32[1,128], index: 4, kind: input, shape index: {}]
  %s5 = inlined_call_operand.vmem [shape: f32[1,128], index: 5, kind: input, shape index: {}]
  %s6 = inlined_call_operand.hbm [shape: f32[8,128], index: 6, kind: output, shape index: {}]
  %s7 = sld [smem:[#allocation0]]
  $region46: #{tpu_custom_call.1} parent=0
    _
  %s9 = ssub.s32 1, %s7
  %s10 = scalar_select 0, %s9, %s7
  $region1: #{tpu_custom_call.1} parent=0
    #allocation2 [shape = 'u8[2048]{0}', space=vmem, size = 0x800, scoped, tag = 'input window, operand 0, single buffered']
    #allocation3 [shape = 's32[1]{0}', space=sflag, size = 0x4, scoped, tag = 'scoped memory for tpu_custom_call.1']
    #allocation4 [shape = 's32[1]{0}', space=sflag, size = 0x4, scoped, tag = 'scoped memory for tpu_custom_call.1']
    #allocation5 [shape = 'u8[8192]{0}', space=vmem, size = 0x2000, scoped, tag = 'input window, operand 1, single buffered']
    #allocation6 [shape = 's32[1]{0}', space=sflag, size = 0x4, scoped, tag = 'scoped memory for tpu_custom_call.1']
    #allocation7 [shape = 'u8[16384]{0}', space=vmem, size = 0x4000, scoped, tag = 'input window, operand 3, single buffered']
    #allocation8 [shape = 'u8[4096]{0}', space=vmem, size = 0x1000, scoped, tag = 'output window, operand 0, single buffered']
    %11 = vsyncpa [#allocation3], 0
    %12 = vsyncpa [#allocation6], 0
    %13 = vsyncpa [#allocation4], 0
    // Predicated region
    $region2: #{tpu_custom_call.1} parent=1 // pred_check
      _
    $region3: #{tpu_custom_call.1} parent=1 // pred_check_branch
      %15 = sbr.rel (0) target = $region5
    $region4: #{tpu_custom_call.1} parent=1 // pred_region
      %17 = vsyncadd [#allocation3], 0
      %s19 = sshll.u32 %s0, 4
      %s20 = int_to_ptr.hbm [resolvable:$true] %s19
      %s21 = sshll.u32 [#allocation2], 4
      %s22 = int_to_ptr.vmem [resolvable:$true] %s21
      %24 = dma.hbm_to_vmem [thread:$0]  %s20, 64, %s22, [#allocation3]
    $region5: #{tpu_custom_call.1} parent=1 // pred_fallthru
      _
    // Predicated region
    $region6: #{tpu_custom_call.1} parent=1 // pred_check
      _
    $region7: #{tpu_custom_call.1} parent=1 // pred_check_branch
      %26 = sbr.rel (0) target = $region9
    $region8: #{tpu_custom_call.1} parent=1 // pred_region
      %28 = vsyncadd [#allocation6], 0
      %s29 = sshll.u32 %s1, 4
      %s30 = int_to_ptr.hbm [resolvable:$true] %s29
      %s31 = sshll.u32 [#allocation5], 4
      %s32 = int_to_ptr.vmem [resolvable:$true] %s31
      %37 = dma.hbm_to_vmem [thread:$0]  %s30, 256, %s32, [#allocation6], 64, 64, 4
    $region9: #{tpu_custom_call.1} parent=1 // pred_fallthru
      _
    // Predicated region
    $region10: #{tpu_custom_call.1} parent=1 // pred_check
      _
    $region11: #{tpu_custom_call.1} parent=1 // pred_check_branch
      %39 = sbr.rel (0) target = $region13
    $region12: #{tpu_custom_call.1} parent=1 // pred_region
      _
    $region13: #{tpu_custom_call.1} parent=1 // pred_fallthru
      _
    // Predicated region
    $region14: #{tpu_custom_call.1} parent=1 // pred_check
      _
    $region15: #{tpu_custom_call.1} parent=1 // pred_check_branch
      %41 = sbr.rel (0) target = $region17
    $region16: #{tpu_custom_call.1} parent=1 // pred_region
      %43 = vsyncadd [#allocation6], 0
      %s44 = sshll.u32 %s3, 4
      %s45 = int_to_ptr.hbm [resolvable:$true] %s44
      %s46 = sshll.u32 [#allocation7], 4
      %s47 = int_to_ptr.vmem [resolvable:$true] %s46
      %52 = dma.hbm_to_vmem [thread:$0]  %s45, 512, %s47, [#allocation6], 128, 128, 8
    $region17: #{tpu_custom_call.1} parent=1 // pred_fallthru
      _
    // Predicated region
    $region18: #{tpu_custom_call.1} parent=1 // pred_check
      _
    $region19: #{tpu_custom_call.1} parent=1 // pred_check_branch
      %54 = sbr.rel (0) target = $region21
    $region20: #{tpu_custom_call.1} parent=1 // pred_region
      _
    $region21: #{tpu_custom_call.1} parent=1 // pred_fallthru
      _
    // Predicated region
    $region22: #{tpu_custom_call.1} parent=1 // pred_check
      _
    $region23: #{tpu_custom_call.1} parent=1 // pred_check_branch
      %56 = sbr.rel (0) target = $region25
    $region24: #{tpu_custom_call.1} parent=1 // pred_region
      _
    $region25: #{tpu_custom_call.1} parent=1 // pred_fallthru
      _
    // Predicated region
    $region26: #{tpu_custom_call.1} parent=1 // pred_check
      _
    $region27: #{tpu_custom_call.1} parent=1 // pred_check_branch
      %58 = sbr.rel (0) target = $region29
    $region28: #{tpu_custom_call.1} parent=1 // pred_region
      %60 = dma.done [#allocation3], 64
    $region29: #{tpu_custom_call.1} parent=1 // pred_fallthru
      _
    // Predicated region
    $region30: #{tpu_custom_call.1} parent=1 // pred_check
      _
    $region31: #{tpu_custom_call.1} parent=1 // pred_check_branch
      %62 = sbr.rel (0) target = $region33
    $region32: #{tpu_custom_call.1} parent=1 // pred_region
      %64 = dma.done [#allocation6], 256
    $region33: #{tpu_custom_call.1} parent=1 // pred_fallthru
      _
    // Predicated region
    $region34: #{tpu_custom_call.1} parent=1 // pred_check
      _
    $region35: #{tpu_custom_call.1} parent=1 // pred_check_branch
      %66 = sbr.rel (0) target = $region37
    $region36: #{tpu_custom_call.1} parent=1 // pred_region
      %68 = dma.done [#allocation6], 512
    $region37: #{tpu_custom_call.1} parent=1 // pred_fallthru
      _
    %v70 = vld [vmem:[#allocation2] sm:$0xf]
    %v71 = vld [vmem:[#allocation5] sm:$0xf]
    %v72 = vld [vmem:[#allocation5 + $0x4] sm:$0xf]
    %v73 = vld [vmem:[#allocation5 + $0x8] sm:$0xf]
    %v74 = vld [vmem:[#allocation5 + $0xc] sm:$0xf]
    %v75 = vld [vmem:[%s2] sm:$0x1]
    %v77 = vperm.slane %v75, 0
    %v83 = vunpack.c.l.b16 %v71
    %v84 = vunpack.c.l.b16 %v72
    %v85 = vunpack.c.l.b16 %v73
    %v86 = vunpack.c.l.b16 %v74
    %v87 = vpack.c.b16 %v84, %v83
    %v88 = vpack.c.b16 %v86, %v85
    %vm91 = vcmask 261120
    %v93 = vsel %vm91, %v70, 0
    %95 = vmatpush.bf16.msra.mxu0 0
    %96 = vmatpush.bf16.msra.mxu0 0
    %97 = vmatpush.bf16.msra.mxu0 0
    %98 = vmatpush.bf16.msra.mxu0 0
    %99 = vmatpush.bf16.msra.mxu0 0
    %100 = vmatpush.bf16.msra.mxu0 0
    %101 = vmatpush.bf16.msra.mxu0 %v88
    %102 = vmatpush.bf16.msra.mxu0 %v87
    %103 = vmatmul.bf16.gmra.mxu0 %v93
    %v104 = vpop.f32.mrf.mxu0
    %v105 = vadd.f32 %v77, %v104
    %v106 = vpop.f32.mrf.mxu0
    %107 = vdwg.mxu0
    %v108 = vxor.u32 %v105, 2147483648
    %v109 = vmul.f32 %v108, 1.442695
    %v110 = vpow.pop %v109
    %v111 = vadd.f32 %v110, 1.0
    %v112 = vrcp.pop %v111
    %v113 = vmul.f32 %v111, %v112
    %v114 = vsub.f32 1.0, %v113
    %v115 = vmul.f32 %v112, %v114
    %v116 = vadd.f32 %v112, %v115
    %vm117 = vweird.f32 %v111
    %vm118 = vweird.f32 %v112
    %vm119 = vmor %vm117, %vm118
    %v120 = vsel %vm119, %v112, %v116
    %v121 = vand.u32 2147483647, %v111
    %vm122 = vcmp.eq.f32.partialorder %v121, 8.507059e+37
    %v123 = vand.u32 %v111, 2147483648
    %v124 = vor.u32 1.1754944e-38, %v123
    %v125 = vsel %vm122, %v124, %v120
    %v126 = vmul.f32 1.0, %v125
    %v127 = vmul.f32 %v105, %v126
    %v128 = vpack.c.bf16 %v127, %v127
    %v129 = vld [vmem:[#allocation7] sm:$0xff]
    %v130 = vld [vmem:[#allocation7 + $0x8] sm:$0xff]
    %v131 = vld [vmem:[#allocation7 + $0x10] sm:$0xff]
    %v132 = vld [vmem:[#allocation7 + $0x18] sm:$0xff]
    %v133 = vunpack.c.0.s8 %v129
    %v134 = vunpack.c.1.s8 %v129
    %v135 = vunpack.c.2.s8 %v129
    %v136 = vunpack.c.3.s8 %v129
    %v137 = vunpack.c.0.s8 %v130
    %v138 = vunpack.c.1.s8 %v130
    %v139 = vunpack.c.2.s8 %v130
    %v140 = vunpack.c.3.s8 %v130
    %v141 = vunpack.c.0.s8 %v131
    %v142 = vunpack.c.1.s8 %v131
    %v143 = vunpack.c.2.s8 %v131
    %v144 = vunpack.c.3.s8 %v131
    %v145 = vunpack.c.0.s8 %v132
    %v146 = vunpack.c.1.s8 %v132
    %v147 = vunpack.c.2.s8 %v132
    %v148 = vunpack.c.3.s8 %v132
    %v149 = vcvt.s32.f32 %v133
    %v150 = vcvt.s32.f32 %v134
    %v151 = vcvt.s32.f32 %v135
    %v152 = vcvt.s32.f32 %v136
    %v153 = vcvt.s32.f32 %v137
    %v154 = vcvt.s32.f32 %v138
    %v155 = vcvt.s32.f32 %v139
    %v156 = vcvt.s32.f32 %v140
    %v157 = vcvt.s32.f32 %v141
    %v158 = vcvt.s32.f32 %v142
    %v159 = vcvt.s32.f32 %v143
    %v160 = vcvt.s32.f32 %v144
    %v161 = vcvt.s32.f32 %v145
    %v162 = vcvt.s32.f32 %v146
    %v163 = vcvt.s32.f32 %v147
    %v164 = vcvt.s32.f32 %v148
    %v165 = vpack.c.bf16 %v150, %v149
    %v166 = vpack.c.bf16 %v152, %v151
    %v167 = vpack.c.bf16 %v154, %v153
    %v168 = vpack.c.bf16 %v156, %v155
    %v169 = vpack.c.bf16 %v158, %v157
    %v170 = vpack.c.bf16 %v160, %v159
    %v171 = vpack.c.bf16 %v162, %v161
    %v172 = vpack.c.bf16 %v164, %v163
    %173 = vmatpush.bf16.msra.mxu0 %v172
    %174 = vmatpush.bf16.msra.mxu0 %v171
    %175 = vmatpush.bf16.msra.mxu0 %v170
    %176 = vmatpush.bf16.msra.mxu0 %v169
    %177 = vmatpush.bf16.msra.mxu0 %v168
    %178 = vmatpush.bf16.msra.mxu0 %v167
    %179 = vmatpush.bf16.msra.mxu0 %v166
    %180 = vmatpush.bf16.msra.mxu0 %v165
    %181 = vmatmul.bf16.gmra.mxu0 %v128
    %v182 = vpop.f32.mrf.mxu0
    %v183 = vadd.f32 0.0, %v182
    %v184 = vpop.f32.mrf.mxu0
    %185 = vdwg.mxu0
    %v186 = vld [vmem:[%s4] sm:$0x1]
    %v188 = vperm.slane %v186, 0
    %v190 = vmul.f32 %v183, %v188
    %v191 = vld [vmem:[%s5] sm:$0x1]
    %v193 = vperm.slane %v191, 0
    %v195 = vadd.f32 %v190, %v193
    %196 = vst [vmem:[#allocation8] sm:$0xff] %v195
    // Predicated region
    $region38: #{tpu_custom_call.1} parent=1 // pred_check
      _
    $region39: #{tpu_custom_call.1} parent=1 // pred_check_branch
      %198 = sbr.rel (0) target = $region41
    $region40: #{tpu_custom_call.1} parent=1 // pred_region
      %200 = vsyncadd [#allocation4], 0
      %s202 = sshll.u32 [#allocation8], 4
      %s203 = int_to_ptr.vmem [resolvable:$true] %s202
      %s204 = sshll.u32 %s6, 4
      %s205 = int_to_ptr.hbm [resolvable:$true] %s204
      %207 = dma.vmem_to_hbm [thread:$0]  %s203, 128, %s205, [#allocation4]
    $region41: #{tpu_custom_call.1} parent=1 // pred_fallthru
      _
    // Predicated region
    $region42: #{tpu_custom_call.1} parent=1 // pred_check
      _
    $region43: #{tpu_custom_call.1} parent=1 // pred_check_branch
      %209 = sbr.rel (0) target = $region45
    $region44: #{tpu_custom_call.1} parent=1 // pred_region
      %211 = dma.done [#allocation4], 128
    $region45: #{tpu_custom_call.1} parent=1 // pred_fallthru
      _
    %212 = vsyncpa [#allocation3], 1
    %213 = vsyncpa [#allocation6], 1
    %214 = vsyncpa [#allocation4], 1

</llo_original>
